<compile_context>
chip_gen: v5e
topology: v5e:2x2
jax: 0.10.0
libtpu: 0.0.40
codegen_flags: <defaults>
</compile_context>

<pallas_src>
import functools

import numpy as np

import jax
import jax.numpy as jnp
from jax.experimental import pallas as pl
from jax.experimental.pallas import tpu as pltpu


def _round_up(x, m):
    return ((x + m - 1) // m) * m


def _pick_t_tile(T, target=512):
    """Largest divisor of T that is <= target and sublane-aligned (or T)."""
    if T <= target:
        return T
    for d in range(target, 0, -1):
        if T % d == 0 and d % 8 == 0:
            return d
    return T


def _tcn_block_kernel(x_ref, w1_ref, b1_ref, w2_ref, b2_ref, wm_ref, bm_ref,
                      res_ref, skip_ref, xc_ref, h1c_ref,
                      *, K, dilation, t_tile, pad):
    """One (batch, time-tile) grid point.

    x_ref   : (1, t_tile, Cp)   input tile, channels-last, compute dtype
    w1_ref  : (K*Cp, Fp)        conv1 weights, taps fused along contraction
    w2_ref  : (K*Fp, Fp)        conv2 weights, taps fused along contraction
    wm_ref  : (Cp, Fp)          1x1 shape-match conv weights
    b*_ref  : (1, Fp)           biases (f32)
    res_ref : (1, t_tile, Fp)   residual output  relu(x2 + F(x))
    skip_ref: (1, t_tile, Fp)   skip output      F(x)
    xc_ref  : (pad, Cp)         carry: last `pad` input rows of previous tile
    h1c_ref : (pad, Fp)         carry: last `pad` h1 rows of previous tile
    """
    t = pl.program_id(1)

    # Causal zero padding: reset carries at the start of every batch element.
    @pl.when(t == 0)
    def _():
        xc_ref[...] = jnp.zeros_like(xc_ref)
        h1c_ref[...] = jnp.zeros_like(h1c_ref)

    x_tile = x_ref[0]                                        # (t_tile, Cp)
    xp = jnp.concatenate([xc_ref[...], x_tile], axis=0)      # (t_tile+pad, Cp)

    # --- conv1: K dilated taps fused into one MXU matmul, then ReLU ---
    xk = jnp.concatenate(
        [xp[k * dilation:k * dilation + t_tile, :] for k in range(K)], axis=1)
    acc1 = jnp.dot(xk, w1_ref[...], preferred_element_type=jnp.float32)
    h1 = jnp.maximum(acc1 + b1_ref[...], 0.0)                # (t_tile, Fp) f32

    h1c = h1.astype(h1c_ref.dtype)
    h1p = jnp.concatenate([h1c_ref[...], h1c], axis=0)       # (t_tile+pad, Fp)

    # Update carries for the next time tile (reads above already consumed them).
    xc_ref[...] = xp[t_tile:t_tile + pad, :]
    h1c_ref[...] = h1p[t_tile:t_tile + pad, :]

    # --- conv2: fused taps, then ReLU (dropout = identity, 2nd ReLU idempotent)
    h1k = jnp.concatenate(
        [h1p[k * dilation:k * dilation + t_tile, :] for k in range(K)], axis=1)
    acc2 = jnp.dot(h1k, w2_ref[...], preferred_element_type=jnp.float32)
    h2 = jnp.maximum(acc2 + b2_ref[...], 0.0)
    skip_ref[0] = h2.astype(skip_ref.dtype)

    # --- 1x1 shape-match conv + residual add + final ReLU ---
    x2 = jnp.dot(x_tile, wm_ref[...],
                 preferred_element_type=jnp.float32) + bm_ref[...]
    res_ref[0] = jnp.maximum(x2 + h2, 0.0).astype(res_ref.dtype)


def tcn_residual_block(x, params, *, dilation, kernel_size, t_tile=None,
                       compute_dtype=jnp.float32):
    """x: (B, Cin, T) float32 (PyTorch Conv1d layout).

    Returns (res_act, skip), both (B, F, T) float32.
    """
    B, Cin, T = x.shape
    K = kernel_size
    pad = dilation * (K - 1)                           # causal pad, all left
    Fo = params['w1'].shape[0]
    assert pad > 0, "TODO(synk): kernel_size == 1 path not implemented"

    Cp = _round_up(Cin, 128)                           # lane-dense channels
    Fp = _round_up(Fo, 128)
    if t_tile is None:
        t_tile = _pick_t_tile(T)
    assert T % t_tile == 0
    assert t_tile == T or t_tile % 8 == 0
    n_t = T // t_tile

    # ---- glue: layout conversion + channel padding + dtype cast ----
    x_tc = jnp.transpose(x, (0, 2, 1))                 # (B, T, Cin)
    if Cp != Cin:
        x_tc = jnp.pad(x_tc, ((0, 0), (0, 0), (0, Cp - Cin)))
    x_tc = x_tc.astype(compute_dtype)

    def prep_tap_weight(w):                            # (F, C, K) -> (K*Cpad, Fp)
        F_o, C_i, _ = w.shape
        C_p = _round_up(C_i, 128)
        wt = jnp.transpose(w, (2, 1, 0))               # (K, C, F), tap-major
        wt = jnp.pad(wt, ((0, 0), (0, C_p - C_i), (0, Fp - F_o)))
        return wt.reshape(K * C_p, Fp).astype(compute_dtype)

    w1 = prep_tap_weight(params['w1'])                 # (K*Cp, Fp)
    w2 = prep_tap_weight(params['w2'])                 # (K*Fp, Fp)
    wm = jnp.pad(jnp.transpose(params['wm'][:, :, 0], (1, 0)),
                 ((0, Cp - Cin), (0, Fp - Fo))).astype(compute_dtype)

    def prep_bias(b):
        return jnp.pad(b, (0, Fp - Fo)).astype(jnp.float32)[None, :]

    b1, b2, bm = (prep_bias(params['b1']), prep_bias(params['b2']),
                  prep_bias(params['bm']))

    # ---- scoped VMEM limit sized from the per-tile buffers (+ headroom) ----
    dsize = np.dtype(compute_dtype).itemsize
    est = (2 * t_tile * Cp * dsize                         # x tile (dbl-buffered)
           + 2 * 2 * t_tile * Fp * 4                       # 2 f32 outputs (dbl-buf)
           + 2 * (K * Cp * Fp + K * Fp * Fp + Cp * Fp) * dsize   # weights
           + 2 * 3 * Fp * 4                                # biases
           + pad * (Cp + Fp) * dsize                       # carries
           + 4 * t_tile * K * max(Cp, Fp) * 4)             # vreg spill headroom
    vmem_limit = int(min(max(2 * est + (4 << 20), 32 << 20), 100 << 20))

    kernel = functools.partial(_tcn_block_kernel, K=K, dilation=dilation,
                               t_tile=t_tile, pad=pad)

    res, skip = pl.pallas_call(
        kernel,
        out_shape=(jax.ShapeDtypeStruct((B, T, Fp), jnp.float32),
                   jax.ShapeDtypeStruct((B, T, Fp), jnp.float32)),
        grid_spec=pltpu.PrefetchScalarGridSpec(
            num_scalar_prefetch=0,
            grid=(B, n_t),
            in_specs=[
                pl.BlockSpec((1, t_tile, Cp), lambda b, t: (b, t, 0)),
                pl.BlockSpec((K * Cp, Fp), lambda b, t: (0, 0)),
                pl.BlockSpec((1, Fp), lambda b, t: (0, 0)),
                pl.BlockSpec((K * Fp, Fp), lambda b, t: (0, 0)),
                pl.BlockSpec((1, Fp), lambda b, t: (0, 0)),
                pl.BlockSpec((Cp, Fp), lambda b, t: (0, 0)),
                pl.BlockSpec((1, Fp), lambda b, t: (0, 0)),
            ],
            out_specs=[
                pl.BlockSpec((1, t_tile, Fp), lambda b, t: (b, t, 0)),
                pl.BlockSpec((1, t_tile, Fp), lambda b, t: (b, t, 0)),
            ],
            scratch_shapes=[
                pltpu.VMEM((pad, Cp), compute_dtype),     # x carry
                pltpu.VMEM((pad, Fp), compute_dtype),     # h1 carry
            ],
        ),
        compiler_params=pltpu.CompilerParams(
            dimension_semantics=("parallel", "arbitrary"),
            vmem_limit_bytes=vmem_limit),
    )(x_tc, w1, b1, w2, b2, wm, bm)

    # back to PyTorch (B, F, T) layout, dropping the channel padding
    res = jnp.transpose(res[:, :, :Fo], (0, 2, 1))
    skip = jnp.transpose(skip[:, :, :Fo], (0, 2, 1))
    return res, skip


def _ref_forward(x, params, *, dilation, kernel_size):
    """Pure-JAX reference matching the PyTorch forward (causal, relu, no norm,
    no dropout)."""
    def causal_conv(h, w, b, d):
        K = w.shape[-1]
        pad = d * (K - 1)
        hp = jnp.pad(h, ((0, 0), (0, 0), (pad, 0)))
        y = jax.lax.conv_general_dilated(
            hp, w, window_strides=(1,), padding='VALID',
            rhs_dilation=(d,), dimension_numbers=('NCH', 'OIH', 'NCH'))
        return y + b[None, :, None]

    relu = lambda v: jnp.maximum(v, 0.0)
    h = relu(causal_conv(x, params['w1'], params['b1'], dilation))
    h = relu(causal_conv(h, params['w2'], params['b2'], dilation))
    h = relu(h)
    x2 = jax.lax.conv_general_dilated(
        x, params['wm'], window_strides=(1,), padding='VALID',
        dimension_numbers=('NCH', 'OIH', 'NCH')) + params['bm'][None, :, None]
    res = relu(x2 + h)
    return res, h


def _init_params(key, input_dim, nb_filters, kernel_size):
    """Deterministic Conv1d-style uniform init (same shapes as torch)."""
    ks = jax.random.split(key, 6)

    def unif(k, shape, fan_in):
        bound = 1.0 / jnp.sqrt(fan_in)
        return jax.random.uniform(k, shape, jnp.float32, -bound, bound)

    return {
        'w1': unif(ks[0], (nb_filters, input_dim, kernel_size),
                   input_dim * kernel_size),
        'b1': unif(ks[1], (nb_filters,), input_dim * kernel_size),
        'w2': unif(ks[2], (nb_filters, nb_filters, kernel_size),
                   nb_filters * kernel_size),
        'b2': unif(ks[3], (nb_filters,), nb_filters * kernel_size),
        'wm': unif(ks[4], (nb_filters, input_dim, 1), input_dim),
        'bm': unif(ks[5], (nb_filters,), input_dim),
    }


if __name__ == "__main__":
    B, Cin, T = 2, 4, 16
    nb_filters, kernel_size, dilation = 8, 3, 2

    key = jax.random.PRNGKey(0)
    kx, kp = jax.random.split(key)
    x = jax.random.normal(kx, (B, Cin, T), jnp.float32)
    params = _init_params(kp, Cin, nb_filters, kernel_size)

    res_ref, skip_ref = _ref_forward(x, params, dilation=dilation,
                                     kernel_size=kernel_size)

    # f32 MXU path; t_tile=8 -> two time tiles so the carry logic is exercised.
    res_act, skip = tcn_residual_block(x, params, dilation=dilation,
                                       kernel_size=kernel_size, t_tile=8,
                                       compute_dtype=jnp.float32)
    jax.block_until_ready((res_act, skip))
    assert res_act.shape == (B, nb_filters, T)
    assert skip.shape == (B, nb_filters, T)
    assert jnp.allclose(res_act, res_ref, atol=1e-5, rtol=1e-5)
    assert jnp.allclose(skip, skip_ref, atol=1e-5, rtol=1e-5)

    # bf16 compute path (v6e/v7x MXU fast path) with f32 accumulation.
    res_bf, skip_bf = tcn_residual_block(x, params, dilation=dilation,
                                         kernel_size=kernel_size, t_tile=8,
                                         compute_dtype=jnp.bfloat16)
    jax.block_until_ready((res_bf, skip_bf))
    assert jnp.allclose(res_bf, res_ref, atol=5e-2, rtol=5e-2)
    assert jnp.allclose(skip_bf, skip_ref, atol=5e-2, rtol=5e-2)

    print("KERNEL_OK")
</pallas_src>

<mosaic_0001>
module attributes {stable_mosaic.version = 11 : i64} {
  func.func @_tcn_block_kernel(%arg0: i32, %arg1: i32, %arg2: memref<1x8x128xf32, #tpu.memory_space<vmem>>, %arg3: memref<384x128xf32, #tpu.memory_space<vmem>>, %arg4: memref<1x128xf32, #tpu.memory_space<vmem>>, %arg5: memref<384x128xf32, #tpu.memory_space<vmem>>, %arg6: memref<1x128xf32, #tpu.memory_space<vmem>>, %arg7: memref<128x128xf32, #tpu.memory_space<vmem>>, %arg8: memref<1x128xf32, #tpu.memory_space<vmem>>, %arg9: memref<1x8x128xf32, #tpu.memory_space<vmem>>, %arg10: memref<1x8x128xf32, #tpu.memory_space<vmem>>, %arg11: memref<4x128xf32, #tpu.memory_space<vmem>>, %arg12: memref<4x128xf32, #tpu.memory_space<vmem>>) attributes {dimension_semantics = [#tpu.dimension_semantics<parallel>, #tpu.dimension_semantics<arbitrary>], iteration_bounds = array<i64: 2, 2>, scalar_prefetch = 0 : i64, scratch_operands = 2 : i64, tpu.core_type = #tpu.core_type<tc>, window_params = [{transform_indices = @transform_0, window_bounds = array<i64: 1, 8, 128>}, {pipeline_mode = #tpu.pipeline_mode<synchronous>, transform_indices = @transform_1, window_bounds = array<i64: 384, 128>}, {pipeline_mode = #tpu.pipeline_mode<synchronous>, transform_indices = @transform_2, window_bounds = array<i64: 1, 128>}, {pipeline_mode = #tpu.pipeline_mode<synchronous>, transform_indices = @transform_3, window_bounds = array<i64: 384, 128>}, {pipeline_mode = #tpu.pipeline_mode<synchronous>, transform_indices = @transform_4, window_bounds = array<i64: 1, 128>}, {pipeline_mode = #tpu.pipeline_mode<synchronous>, transform_indices = @transform_5, window_bounds = array<i64: 128, 128>}, {pipeline_mode = #tpu.pipeline_mode<synchronous>, transform_indices = @transform_6, window_bounds = array<i64: 1, 128>}, {transform_indices = @transform_7, window_bounds = array<i64: 1, 8, 128>}, {transform_indices = @transform_8, window_bounds = array<i64: 1, 8, 128>}]} {
    %c0_i32 = arith.constant 0 : i32
    %0 = arith.cmpi eq, %arg1, %c0_i32 : i32
    %1 = arith.extui %0 : i1 to i32
    %c0_i32_0 = arith.constant 0 : i32
    %2 = arith.cmpi ne, %1, %c0_i32_0 : i32
    scf.if %2 {
      %cst_34 = arith.constant 0.000000e+00 : f32
      %49 = vector.broadcast %cst_34 : f32 to vector<4x128xf32>
      %c0_35 = arith.constant 0 : index
      %c0_36 = arith.constant 0 : index
      %50 = vector.load %arg11[%c0_35, %c0_36] : memref<4x128xf32, #tpu.memory_space<vmem>>, vector<4x128xf32>
      tpu.vector_store %arg11[%c0_35, %c0_36], %49 {strides = array<i32>} : memref<4x128xf32, #tpu.memory_space<vmem>>, vector<4x128xf32>,
      %cst_37 = arith.constant 0.000000e+00 : f32
      %51 = vector.broadcast %cst_37 : f32 to vector<4x128xf32>
      %c0_38 = arith.constant 0 : index
      %c0_39 = arith.constant 0 : index
      %52 = vector.load %arg12[%c0_38, %c0_39] : memref<4x128xf32, #tpu.memory_space<vmem>>, vector<4x128xf32>
      tpu.vector_store %arg12[%c0_38, %c0_39], %51 {strides = array<i32>} : memref<4x128xf32, #tpu.memory_space<vmem>>, vector<4x128xf32>,
    } else {
    }
    %c0 = arith.constant 0 : index
    %c0_1 = arith.constant 0 : index
    %c0_2 = arith.constant 0 : index
    %3 = vector.load %arg2[%c0, %c0_1, %c0_2] : memref<1x8x128xf32, #tpu.memory_space<vmem>>, vector<1x8x128xf32>
    %4 = vector.shape_cast %3 : vector<1x8x128xf32> to vector<8x128xf32>
    %c0_3 = arith.constant 0 : index
    %c0_4 = arith.constant 0 : index
    %5 = vector.load %arg11[%c0_3, %c0_4] : memref<4x128xf32, #tpu.memory_space<vmem>>, vector<4x128xf32>
    %6 = tpu.concatenate %5, %4 in 0 : vector<4x128xf32>, vector<8x128xf32> -> vector<12x128xf32>
    %7 = vector.extract_strided_slice %6 {offsets = [0, 0], sizes = [8, 128], strides = [1, 1]} : vector<12x128xf32> to vector<8x128xf32>
    %8 = vector.extract_strided_slice %6 {offsets = [2, 0], sizes = [8, 128], strides = [1, 1]} : vector<12x128xf32> to vector<8x128xf32>
    %9 = vector.extract_strided_slice %6 {offsets = [4, 0], sizes = [8, 128], strides = [1, 1]} : vector<12x128xf32> to vector<8x128xf32>
    %10 = tpu.concatenate %7, %8, %9 in 1 : vector<8x128xf32>, vector<8x128xf32>, vector<8x128xf32> -> vector<8x384xf32>
    %c0_5 = arith.constant 0 : index
    %c0_6 = arith.constant 0 : index
    %11 = vector.load %arg3[%c0_5, %c0_6] : memref<384x128xf32, #tpu.memory_space<vmem>>, vector<384x128xf32>
    %cst = arith.constant dense<0.000000e+00> : vector<8x128xf32>
    %12 = tpu.matmul %10, %11, %cst {dimension_numbers = #tpu.dot_dimension_numbers<[1], [0], [0], [1], [0, 0, 1, 1], [], []>} : vector<8x384xf32>, vector<384x128xf32>, vector<8x128xf32> -> vector<8x128xf32>
    %c0_7 = arith.constant 0 : index
    %c0_8 = arith.constant 0 : index
    %13 = vector.load %arg4[%c0_7, %c0_8] : memref<1x128xf32, #tpu.memory_space<vmem>>, vector<1x128xf32>
    %14 = vector.broadcast %13 : vector<1x128xf32> to vector<8x128xf32>
    %15 = arith.addf %12, %14 : vector<8x128xf32>
    %cst_9 = arith.constant 0.000000e+00 : f32
    %16 = vector.broadcast %cst_9 : f32 to vector<8x128xf32>
    %17 = arith.maximumf %15, %16 : vector<8x128xf32>
    %c0_10 = arith.constant 0 : index
    %c0_11 = arith.constant 0 : index
    %18 = vector.load %arg12[%c0_10, %c0_11] : memref<4x128xf32, #tpu.memory_space<vmem>>, vector<4x128xf32>
    %19 = tpu.concatenate %18, %17 in 0 : vector<4x128xf32>, vector<8x128xf32> -> vector<12x128xf32>
    %20 = vector.extract_strided_slice %6 {offsets = [8, 0], sizes = [4, 128], strides = [1, 1]} : vector<12x128xf32> to vector<4x128xf32>
    %c0_12 = arith.constant 0 : index
    %c0_13 = arith.constant 0 : index
    %21 = vector.load %arg11[%c0_12, %c0_13] : memref<4x128xf32, #tpu.memory_space<vmem>>, vector<4x128xf32>
    tpu.vector_store %arg11[%c0_12, %c0_13], %20 {strides = array<i32>} : memref<4x128xf32, #tpu.memory_space<vmem>>, vector<4x128xf32>,
    %22 = vector.extract_strided_slice %19 {offsets = [8, 0], sizes = [4, 128], strides = [1, 1]} : vector<12x128xf32> to vector<4x128xf32>
    %c0_14 = arith.constant 0 : index
    %c0_15 = arith.constant 0 : index
    %23 = vector.load %arg12[%c0_14, %c0_15] : memref<4x128xf32, #tpu.memory_space<vmem>>, vector<4x128xf32>
    tpu.vector_store %arg12[%c0_14, %c0_15], %22 {strides = array<i32>} : memref<4x128xf32, #tpu.memory_space<vmem>>, vector<4x128xf32>,
    %24 = vector.extract_strided_slice %19 {offsets = [0, 0], sizes = [8, 128], strides = [1, 1]} : vector<12x128xf32> to vector<8x128xf32>
    %25 = vector.extract_strided_slice %19 {offsets = [2, 0], sizes = [8, 128], strides = [1, 1]} : vector<12x128xf32> to vector<8x128xf32>
    %26 = vector.extract_strided_slice %19 {offsets = [4, 0], sizes = [8, 128], strides = [1, 1]} : vector<12x128xf32> to vector<8x128xf32>
    %27 = tpu.concatenate %24, %25, %26 in 1 : vector<8x128xf32>, vector<8x128xf32>, vector<8x128xf32> -> vector<8x384xf32>
    %c0_16 = arith.constant 0 : index
    %c0_17 = arith.constant 0 : index
    %28 = vector.load %arg5[%c0_16, %c0_17] : memref<384x128xf32, #tpu.memory_space<vmem>>, vector<384x128xf32>
    %cst_18 = arith.constant dense<0.000000e+00> : vector<8x128xf32>
    %29 = tpu.matmul %27, %28, %cst_18 {dimension_numbers = #tpu.dot_dimension_numbers<[1], [0], [0], [1], [0, 0, 1, 1], [], []>} : vector<8x384xf32>, vector<384x128xf32>, vector<8x128xf32> -> vector<8x128xf32>
    %c0_19 = arith.constant 0 : index
    %c0_20 = arith.constant 0 : index
    %30 = vector.load %arg6[%c0_19, %c0_20] : memref<1x128xf32, #tpu.memory_space<vmem>>, vector<1x128xf32>
    %31 = vector.broadcast %30 : vector<1x128xf32> to vector<8x128xf32>
    %32 = arith.addf %29, %31 : vector<8x128xf32>
    %cst_21 = arith.constant 0.000000e+00 : f32
    %33 = vector.broadcast %cst_21 : f32 to vector<8x128xf32>
    %34 = arith.maximumf %32, %33 : vector<8x128xf32>
    %c0_22 = arith.constant 0 : index
    %c0_23 = arith.constant 0 : index
    %c0_24 = arith.constant 0 : index
    %35 = vector.load %arg10[%c0_22, %c0_23, %c0_24] : memref<1x8x128xf32, #tpu.memory_space<vmem>>, vector<1x8x128xf32>
    %36 = vector.shape_cast %35 : vector<1x8x128xf32> to vector<8x128xf32>
    %37 = vector.shape_cast %34 : vector<8x128xf32> to vector<1x8x128xf32>
    tpu.vector_store %arg10[%c0_22, %c0_23, %c0_24], %37 {strides = array<i32>} : memref<1x8x128xf32, #tpu.memory_space<vmem>>, vector<1x8x128xf32>,
    %c0_25 = arith.constant 0 : index
    %c0_26 = arith.constant 0 : index
    %38 = vector.load %arg7[%c0_25, %c0_26] : memref<128x128xf32, #tpu.memory_space<vmem>>, vector<128x128xf32>
    %cst_27 = arith.constant dense<0.000000e+00> : vector<8x128xf32>
    %39 = tpu.matmul %4, %38, %cst_27 {dimension_numbers = #tpu.dot_dimension_numbers<[1], [0], [0], [1], [0, 0, 1, 1], [], []>} : vector<8x128xf32>, vector<128x128xf32>, vector<8x128xf32> -> vector<8x128xf32>
    %c0_28 = arith.constant 0 : index
    %c0_29 = arith.constant 0 : index
    %40 = vector.load %arg8[%c0_28, %c0_29] : memref<1x128xf32, #tpu.memory_space<vmem>>, vector<1x128xf32>
    %41 = vector.broadcast %40 : vector<1x128xf32> to vector<8x128xf32>
    %42 = arith.addf %39, %41 : vector<8x128xf32>
    %43 = arith.addf %42, %34 : vector<8x128xf32>
    %cst_30 = arith.constant 0.000000e+00 : f32
    %44 = vector.broadcast %cst_30 : f32 to vector<8x128xf32>
    %45 = arith.maximumf %43, %44 : vector<8x128xf32>
    %c0_31 = arith.constant 0 : index
    %c0_32 = arith.constant 0 : index
    %c0_33 = arith.constant 0 : index
    %46 = vector.load %arg9[%c0_31, %c0_32, %c0_33] : memref<1x8x128xf32, #tpu.memory_space<vmem>>, vector<1x8x128xf32>
    %47 = vector.shape_cast %46 : vector<1x8x128xf32> to vector<8x128xf32>
    %48 = vector.shape_cast %45 : vector<8x128xf32> to vector<1x8x128xf32>
    tpu.vector_store %arg9[%c0_31, %c0_32, %c0_33], %48 {strides = array<i32>} : memref<1x8x128xf32, #tpu.memory_space<vmem>>, vector<1x8x128xf32>,
    return
  }
  func.func @transform_0(%arg0: i32, %arg1: i32) -> (i32, i32, i32) {
    %c0_i32 = arith.constant 0 : i32
    %c0_i32_0 = arith.constant 0 : i32
    return %arg0, %arg1, %c0_i32 : i32, i32, i32
  }
  func.func @transform_1(%arg0: i32, %arg1: i32) -> (i32, i32) {
    %c0_i32 = arith.constant 0 : i32
    %c0_i32_0 = arith.constant 0 : i32
    %c0_i32_1 = arith.constant 0 : i32
    return %c0_i32, %c0_i32_0 : i32, i32
  }
  func.func @transform_2(%arg0: i32, %arg1: i32) -> (i32, i32) {
    %c0_i32 = arith.constant 0 : i32
    %c0_i32_0 = arith.constant 0 : i32
    %c0_i32_1 = arith.constant 0 : i32
    return %c0_i32, %c0_i32_0 : i32, i32
  }
  func.func @transform_3(%arg0: i32, %arg1: i32) -> (i32, i32) {
    %c0_i32 = arith.constant 0 : i32
    %c0_i32_0 = arith.constant 0 : i32
    %c0_i32_1 = arith.constant 0 : i32
    return %c0_i32, %c0_i32_0 : i32, i32
  }
  func.func @transform_4(%arg0: i32, %arg1: i32) -> (i32, i32) {
    %c0_i32 = arith.constant 0 : i32
    %c0_i32_0 = arith.constant 0 : i32
    %c0_i32_1 = arith.constant 0 : i32
    return %c0_i32, %c0_i32_0 : i32, i32
  }
  func.func @transform_5(%arg0: i32, %arg1: i32) -> (i32, i32) {
    %c0_i32 = arith.constant 0 : i32
    %c0_i32_0 = arith.constant 0 : i32
    %c0_i32_1 = arith.constant 0 : i32
    return %c0_i32, %c0_i32_0 : i32, i32
  }
  func.func @transform_6(%arg0: i32, %arg1: i32) -> (i32, i32) {
    %c0_i32 = arith.constant 0 : i32
    %c0_i32_0 = arith.constant 0 : i32
    %c0_i32_1 = arith.constant 0 : i32
    return %c0_i32, %c0_i32_0 : i32, i32
  }
  func.func @transform_7(%arg0: i32, %arg1: i32) -> (i32, i32, i32) {
    %c0_i32 = arith.constant 0 : i32
    %c0_i32_0 = arith.constant 0 : i32
    return %arg0, %arg1, %c0_i32 : i32, i32, i32
  }
  func.func @transform_8(%arg0: i32, %arg1: i32) -> (i32, i32, i32) {
    %c0_i32 = arith.constant 0 : i32
    %c0_i32_0 = arith.constant 0 : i32
    return %arg0, %arg1, %c0_i32 : i32, i32, i32
  }
}

</mosaic_0001>

<llo_original>
// kernel: tpu_custom_call.1
$region0: #{tpu_custom_call.1}
  #allocation0 [shape = 'u32[]', space=smem, size = 0x4, offset = 0x4, fixed_abs, tag = 'smem constant byte address 0x4 - core index']
  #allocation1 [shape = 'u32[72,128]{1,0:T(1,128)}', space=vmem, size = 0x9000, scoped, tag = 'internal scratch']
  #allocation2 [shape = 'f32[4,128]{1,0:T(4,128)}', space=vmem, size = 0x800, scoped, tag = 'scratch operand']
  #allocation3 [shape = 'f32[4,128]{1,0:T(4,128)}', space=vmem, size = 0x800, scoped, tag = 'scratch operand']
  %s0 = inlined_call_operand.hbm [shape: f32[2,16,128], index: 0, kind: input, shape index: {}]
  %s1 = inlined_call_operand.hbm [shape: f32[384,128], index: 1, kind: input, shape index: {}]
  %s2 = inlined_call_operand.vmem [shape: f32[1,128], index: 2, kind: input, shape index: {}]
  %s3 = inlined_call_operand.hbm [shape: f32[384,128], index: 3, kind: input, shape index: {}]
  %s4 = inlined_call_operand.vmem [shape: f32[1,128], index: 4, kind: input, shape index: {}]
  %s5 = inlined_call_operand.hbm [shape: f32[128,128], index: 5, kind: input, shape index: {}]
  %s6 = inlined_call_operand.vmem [shape: f32[1,128], index: 6, kind: input, shape index: {}]
  %s7 = inlined_call_operand.hbm [shape: f32[2,16,128], index: 7, kind: output, shape index: {0}]
  %s8 = inlined_call_operand.hbm [shape: f32[2,16,128], index: 8, kind: output, shape index: {1}]
  %9 = xla_tuple %s7, %s8
  %s10 = sld [smem:[#allocation0]]
  $region89: #{tpu_custom_call.1} parent=0
    _
  %s12 = ssub.s32 1, %s10
  %s13 = scalar_select 0, %s12, %s10
  $region1: #{tpu_custom_call.1} parent=0
    #allocation4 [shape = 'u8[8192]{0}', space=vmem, size = 0x2000, scoped, tag = 'input window, operand 0']
    #allocation5 [shape = 's32[2]{0}', space=sflag, size = 0x8, scoped, tag = 'scoped memory for tpu_custom_call.1']
    #allocation6 [shape = 's32[2]{0}', space=sflag, size = 0x8, scoped, tag = 'scoped memory for tpu_custom_call.1']
    #allocation7 [shape = 'u8[196608]{0}', space=vmem, size = 0x30000, scoped, tag = 'input window, operand 1, single buffered']
    #allocation8 [shape = 's32[1]{0}', space=sflag, size = 0x4, scoped, tag = 'scoped memory for tpu_custom_call.1']
    #allocation9 [shape = 'u8[196608]{0}', space=vmem, size = 0x30000, scoped, tag = 'input window, operand 3, single buffered']
    #allocation10 [shape = 'u8[65536]{0}', space=vmem, size = 0x10000, scoped, tag = 'input window, operand 5, single buffered']
    #allocation11 [shape = 's32[1]{0}', space=sflag, size = 0x4, scoped, tag = 'scoped memory for tpu_custom_call.1']
    #allocation12 [shape = 'u8[8192]{0}', space=vmem, size = 0x2000, scoped, tag = 'output window, operand 0']
    #allocation13 [shape = 'u8[8192]{0}', space=vmem, size = 0x2000, scoped, tag = 'output window, operand 1']
    #allocation14 [shape = 's32[2]{0}', space=sflag, size = 0x8, scoped, tag = 'scoped memory for tpu_custom_call.1']
    %14 = vsyncpa [#allocation5], 0
    %s15 = scalar_lea.sflag [#allocation5], 1
    %16 = vsyncpa %s15, 0
    %17 = vsyncpa [#allocation8], 0
    %18 = vsyncpa [#allocation11], 0
    %19 = vsyncpa [#allocation6], 0
    %s20 = scalar_lea.sflag [#allocation6], 1
    %21 = vsyncpa %s20, 0
    %22 = vsyncpa [#allocation14], 0
    %s23 = scalar_lea.sflag [#allocation14], 1
    %24 = vsyncpa %s23, 0
    loop: start=0, step=1, limit=6
    $region2: #{tpu_custom_call.1} parent=1 // loop_pre_header
      _
    $region3: #{tpu_custom_call.1} parent=1 // loop_header
      %s26 = sphi 0, %s30
      %p27 = scmp.ge.s32.totalorder %s26, 6
      %s33 = sphi 0, %s45
      %s34 = sphi 0, %s41
      %s35 = sphi 0, %s33
      %s36 = sphi 0, %s34
      %s37 = sphi 0, %s35
      %s38 = sphi 0, %s36
      %s50 = sphi 0, %s52
      %s53 = sphi 0, %s50
      %s54 = sphi 0, %s53
      %s70 = sphi 0, %s54
      %s74 = sphi 0, %s74
      %s76 = sphi 0, %s74
      %s77 = sphi 0, %s76
      %s91 = sphi 0, %s77
      %s95 = sphi 0, %s95
      %s97 = sphi 0, %s95
      %s98 = sphi 0, %s97
      %s112 = sphi 0, %s98
      %s116 = sphi 0, %s116
      %s118 = sphi 0, %s116
      %s119 = sphi 0, %s118
      %s133 = sphi 0, %s119
      %s137 = sphi 0, %s137
      %s139 = sphi 0, %s137
      %s140 = sphi 0, %s139
      %s154 = sphi 0, %s140
      %s158 = sphi 0, %s158
      %s160 = sphi 0, %s158
      %s161 = sphi 0, %s160
      %s175 = sphi 0, %s161
      %s179 = sphi 0, %s179
      %s181 = sphi 0, %s179
      %s182 = sphi 0, %s181
      %s196 = sphi 0, %s182
      %s204 = sphi 0, %s206
      %s207 = sphi 0, %s204
      %s208 = sphi 0, %s207
      %s224 = sphi 0, %s208
      %s232 = sphi 0, %s234
      %s235 = sphi 0, %s232
      %s236 = sphi 0, %s235
      %s252 = sphi 0, %s236
    $region4: #{tpu_custom_call.1} parent=1 // loop_header_branch
      %29 = sbr.rel (%p27) target = $region8
    $region5: #{tpu_custom_call.1} parent=1 // loop_body
      %s31 = ssub.s32 %s26, 1
      %s32 = ssub.s32 %s26, 2
      %s39 = sadd.s32 1, %s34
      %p40 = scmp.ge.s32.totalorder %s39, 2
      %s41 = scalar_select %p40, 0, %s39
      %s42 = sadd.s32 1, %s33
      %s43 = scalar_select %p40, %s42, %s33
      %p44 = scmp.ge.s32.totalorder %s43, 2
      %s45 = scalar_select %p44, 0, %s43
      %s46 = ssub.s32 %s33, %s45
      %s47 = ssub.s32 %s34, %s41
      %s48 = sor.u32 %s46, %s47
      %p49 = scmp.eq.s32.totalorder %s48, 0
      %s51 = sadd.s32 %s50, 1
      %s52 = scalar_select %p49, %s50, %s51
      %p55 = pneg %p49
      %p56 = scmp.eq.s32.totalorder %s26, 3
      %p57 = por %p55, %p56
      %p58 = scmp.ne.s32.totalorder %s50, %s53
      %p59 = scmp.eq.s32.totalorder %s26, 0
      %p60 = por %p58, %p59
      %p61 = scmp.ne.s32.totalorder %s50, %s53
      %p62 = scmp.eq.s32.totalorder %s31, 3
      %p63 = por %p61, %p62
      %p64 = scmp.ne.s32.totalorder %s53, %s54
      %p65 = scmp.eq.s32.totalorder %s31, 0
      %p66 = por %p64, %p65
      %p67 = scmp.ne.s32.totalorder %s53, %s54
      %p68 = scmp.eq.s32.totalorder %s32, 3
      %p69 = por %p67, %p68
      %p71 = scmp.ne.s32.totalorder %s54, %s70
      %p72 = scmp.eq.s32.totalorder %s32, 0
      %p73 = por %p71, %p72
      %s75 = sadd.s32 %s74, 1
      %p78 = scmp.eq.s32.totalorder %s26, 3
      %p79 = scmp.ne.s32.totalorder %s74, %s76
      %p80 = scmp.eq.s32.totalorder %s26, 0
      %p81 = por %p79, %p80
      %p82 = scmp.ne.s32.totalorder %s74, %s76
      %p83 = scmp.eq.s32.totalorder %s31, 3
      %p84 = por %p82, %p83
      %p85 = scmp.ne.s32.totalorder %s76, %s77
      %p86 = scmp.eq.s32.totalorder %s31, 0
      %p87 = por %p85, %p86
      %p88 = scmp.ne.s32.totalorder %s76, %s77
      %p89 = scmp.eq.s32.totalorder %s32, 3
      %p90 = por %p88, %p89
      %p92 = scmp.ne.s32.totalorder %s77, %s91
      %p93 = scmp.eq.s32.totalorder %s32, 0
      %p94 = por %p92, %p93
      %s96 = sadd.s32 %s95, 1
      %p99 = scmp.eq.s32.totalorder %s26, 3
      %p100 = scmp.ne.s32.totalorder %s95, %s97
      %p101 = scmp.eq.s32.totalorder %s26, 0
      %p102 = por %p100, %p101
      %p103 = scmp.ne.s32.totalorder %s95, %s97
      %p104 = scmp.eq.s32.totalorder %s31, 3
      %p105 = por %p103, %p104
      %p106 = scmp.ne.s32.totalorder %s97, %s98
      %p107 = scmp.eq.s32.totalorder %s31, 0
      %p108 = por %p106, %p107
      %p109 = scmp.ne.s32.totalorder %s97, %s98
      %p110 = scmp.eq.s32.totalorder %s32, 3
      %p111 = por %p109, %p110
      %p113 = scmp.ne.s32.totalorder %s98, %s112
      %p114 = scmp.eq.s32.totalorder %s32, 0
      %p115 = por %p113, %p114
      %s117 = sadd.s32 %s116, 1
      %p120 = scmp.eq.s32.totalorder %s26, 3
      %p121 = scmp.ne.s32.totalorder %s116, %s118
      %p122 = scmp.eq.s32.totalorder %s26, 0
      %p123 = por %p121, %p122
      %p124 = scmp.ne.s32.totalorder %s116, %s118
      %p125 = scmp.eq.s32.totalorder %s31, 3
      %p126 = por %p124, %p125
      %p127 = scmp.ne.s32.totalorder %s118, %s119
      %p128 = scmp.eq.s32.totalorder %s31, 0
      %p129 = por %p127, %p128
      %p130 = scmp.ne.s32.totalorder %s118, %s119
      %p131 = scmp.eq.s32.totalorder %s32, 3
      %p132 = por %p130, %p131
      %p134 = scmp.ne.s32.totalorder %s119, %s133
      %p135 = scmp.eq.s32.totalorder %s32, 0
      %p136 = por %p134, %p135
      %s138 = sadd.s32 %s137, 1
      %p141 = scmp.eq.s32.totalorder %s26, 3
      %p142 = scmp.ne.s32.totalorder %s137, %s139
      %p143 = scmp.eq.s32.totalorder %s26, 0
      %p144 = por %p142, %p143
      %p145 = scmp.ne.s32.totalorder %s137, %s139
      %p146 = scmp.eq.s32.totalorder %s31, 3
      %p147 = por %p145, %p146
      %p148 = scmp.ne.s32.totalorder %s139, %s140
      %p149 = scmp.eq.s32.totalorder %s31, 0
      %p150 = por %p148, %p149
      %p151 = scmp.ne.s32.totalorder %s139, %s140
      %p152 = scmp.eq.s32.totalorder %s32, 3
      %p153 = por %p151, %p152
      %p155 = scmp.ne.s32.totalorder %s140, %s154
      %p156 = scmp.eq.s32.totalorder %s32, 0
      %p157 = por %p155, %p156
      %s159 = sadd.s32 %s158, 1
      %p162 = scmp.eq.s32.totalorder %s26, 3
      %p163 = scmp.ne.s32.totalorder %s158, %s160
      %p164 = scmp.eq.s32.totalorder %s26, 0
      %p165 = por %p163, %p164
      %p166 = scmp.ne.s32.totalorder %s158, %s160
      %p167 = scmp.eq.s32.totalorder %s31, 3
      %p168 = por %p166, %p167
      %p169 = scmp.ne.s32.totalorder %s160, %s161
      %p170 = scmp.eq.s32.totalorder %s31, 0
      %p171 = por %p169, %p170
      %p172 = scmp.ne.s32.totalorder %s160, %s161
      %p173 = scmp.eq.s32.totalorder %s32, 3
      %p174 = por %p172, %p173
      %p176 = scmp.ne.s32.totalorder %s161, %s175
      %p177 = scmp.eq.s32.totalorder %s32, 0
      %p178 = por %p176, %p177
      %s180 = sadd.s32 %s179, 1
      %p183 = scmp.eq.s32.totalorder %s26, 3
      %p184 = scmp.ne.s32.totalorder %s179, %s181
      %p185 = scmp.eq.s32.totalorder %s26, 0
      %p186 = por %p184, %p185
      %p187 = scmp.ne.s32.totalorder %s179, %s181
      %p188 = scmp.eq.s32.totalorder %s31, 3
      %p189 = por %p187, %p188
      %p190 = scmp.ne.s32.totalorder %s181, %s182
      %p191 = scmp.eq.s32.totalorder %s31, 0
      %p192 = por %p190, %p191
      %p193 = scmp.ne.s32.totalorder %s181, %s182
      %p194 = scmp.eq.s32.totalorder %s32, 3
      %p195 = por %p193, %p194
      %p197 = scmp.ne.s32.totalorder %s182, %s196
      %p198 = scmp.eq.s32.totalorder %s32, 0
      %p199 = por %p197, %p198
      %s200 = ssub.s32 %s33, %s45
      %s201 = ssub.s32 %s34, %s41
      %s202 = sor.u32 %s200, %s201
      %p203 = scmp.eq.s32.totalorder %s202, 0
      %s205 = sadd.s32 %s204, 1
      %s206 = scalar_select %p203, %s204, %s205
      %p209 = pneg %p203
      %p210 = scmp.eq.s32.totalorder %s26, 3
      %p211 = por %p209, %p210
      %p212 = scmp.ne.s32.totalorder %s204, %s207
      %p213 = scmp.eq.s32.totalorder %s26, 0
      %p214 = por %p212, %p213
      %p215 = scmp.ne.s32.totalorder %s204, %s207
      %p216 = scmp.eq.s32.totalorder %s31, 3
      %p217 = por %p215, %p216
      %p218 = scmp.ne.s32.totalorder %s207, %s208
      %p219 = scmp.eq.s32.totalorder %s31, 0
      %p220 = por %p218, %p219
      %p221 = scmp.ne.s32.totalorder %s207, %s208
      %p222 = scmp.eq.s32.totalorder %s32, 3
      %p223 = por %p221, %p222
      %p225 = scmp.ne.s32.totalorder %s208, %s224
      %p226 = scmp.eq.s32.totalorder %s32, 0
      %p227 = por %p225, %p226
      %s228 = ssub.s32 %s33, %s45
      %s229 = ssub.s32 %s34, %s41
      %s230 = sor.u32 %s228, %s229
      %p231 = scmp.eq.s32.totalorder %s230, 0
      %s233 = sadd.s32 %s232, 1
      %s234 = scalar_select %p231, %s232, %s233
      %p237 = pneg %p231
      %p238 = scmp.eq.s32.totalorder %s26, 3
      %p239 = por %p237, %p238
      %p240 = scmp.ne.s32.totalorder %s232, %s235
      %p241 = scmp.eq.s32.totalorder %s26, 0
      %p242 = por %p240, %p241
      %p243 = scmp.ne.s32.totalorder %s232, %s235
      %p244 = scmp.eq.s32.totalorder %s31, 3
      %p245 = por %p243, %p244
      %p246 = scmp.ne.s32.totalorder %s235, %s236
      %p247 = scmp.eq.s32.totalorder %s31, 0
      %p248 = por %p246, %p247
      %p249 = scmp.ne.s32.totalorder %s235, %s236
      %p250 = scmp.eq.s32.totalorder %s32, 3
      %p251 = por %p249, %p250
      %p253 = scmp.ne.s32.totalorder %s236, %s252
      %p254 = scmp.eq.s32.totalorder %s32, 0
      %p255 = por %p253, %p254
      %p256 = scmp.le.s32.totalorder 1, %s26
      %p257 = scmp.lt.s32.totalorder %s26, 5
      %p258 = pnand %p256, %p257
      %p259 = pneg %p258
      // Predicated region
      $region9: #{tpu_custom_call.1} parent=5 // pred_check
        _
      $region10: #{tpu_custom_call.1} parent=5 // pred_check_branch
        %261 = sbr.rel (%p258) target = $region12
      $region11: #{tpu_custom_call.1} parent=5 // pred_region
        %s262 = ssub.s32 %s26, 1
        // Predicated region
        $region13: #{tpu_custom_call.1} parent=11 // pred_check
          %p263 = pneg %p87
        $region14: #{tpu_custom_call.1} parent=11 // pred_check_branch
          %265 = sbr.rel (%p263) target = $region16
        $region15: #{tpu_custom_call.1} parent=11 // pred_region
          %267 = vsyncadd [#allocation8], 0
          %s268 = sshll.u32 %s1, 4
          %s269 = int_to_ptr.hbm [resolvable:$true] %s268
          %s270 = sshll.u32 [#allocation7], 4
          %s271 = int_to_ptr.vmem [resolvable:$true] %s270
          %276 = dma.hbm_to_vmem [thread:$0]  %s269, 6144, %s271, [#allocation8], 128, 128, 8
        $region16: #{tpu_custom_call.1} parent=11 // pred_fallthru
          _
        // Predicated region
        $region17: #{tpu_custom_call.1} parent=11 // pred_check
          %p277 = pneg %p108
        $region18: #{tpu_custom_call.1} parent=11 // pred_check_branch
          %279 = sbr.rel (%p277) target = $region20
        $region19: #{tpu_custom_call.1} parent=11 // pred_region
          _
        $region20: #{tpu_custom_call.1} parent=11 // pred_fallthru
          _
        // Predicated region
        $region21: #{tpu_custom_call.1} parent=11 // pred_check
          %p280 = pneg %p129
        $region22: #{tpu_custom_call.1} parent=11 // pred_check_branch
          %282 = sbr.rel (%p280) target = $region24
        $region23: #{tpu_custom_call.1} parent=11 // pred_region
          %284 = vsyncadd [#allocation8], 0
          %s285 = sshll.u32 %s3, 4
          %s286 = int_to_ptr.hbm [resolvable:$true] %s285
          %s287 = sshll.u32 [#allocation9], 4
          %s288 = int_to_ptr.vmem [resolvable:$true] %s287
          %293 = dma.hbm_to_vmem [thread:$0]  %s286, 6144, %s288, [#allocation8], 128, 128, 8
        $region24: #{tpu_custom_call.1} parent=11 // pred_fallthru
          _
        // Predicated region
        $region25: #{tpu_custom_call.1} parent=11 // pred_check
          %p294 = pneg %p150
        $region26: #{tpu_custom_call.1} parent=11 // pred_check_branch
          %296 = sbr.rel (%p294) target = $region28
        $region27: #{tpu_custom_call.1} parent=11 // pred_region
          _
        $region28: #{tpu_custom_call.1} parent=11 // pred_fallthru
          _
        // Predicated region
        $region29: #{tpu_custom_call.1} parent=11 // pred_check
          %p297 = pneg %p171
        $region30: #{tpu_custom_call.1} parent=11 // pred_check_branch
          %299 = sbr.rel (%p297) target = $region32
        $region31: #{tpu_custom_call.1} parent=11 // pred_region
          %301 = vsyncadd [#allocation11], 0
          %s302 = sshll.u32 %s5, 4
          %s303 = int_to_ptr.hbm [resolvable:$true] %s302
          %s304 = sshll.u32 [#allocation10], 4
          %s305 = int_to_ptr.vmem [resolvable:$true] %s304
          %310 = dma.hbm_to_vmem [thread:$0]  %s303, 2048, %s305, [#allocation11], 128, 128, 8
        $region32: #{tpu_custom_call.1} parent=11 // pred_fallthru
          _
        // Predicated region
        $region33: #{tpu_custom_call.1} parent=11 // pred_check
          %p311 = pneg %p192
        $region34: #{tpu_custom_call.1} parent=11 // pred_check_branch
          %313 = sbr.rel (%p311) target = $region36
        $region35: #{tpu_custom_call.1} parent=11 // pred_region
          _
        $region36: #{tpu_custom_call.1} parent=11 // pred_fallthru
          _
      $region12: #{tpu_custom_call.1} parent=5 // pred_fallthru
        _
      %p314 = scmp.lt.s32.totalorder %s26, 4
      // Predicated region
      $region37: #{tpu_custom_call.1} parent=5 // pred_check
        %p315 = pneg %p314
      $region38: #{tpu_custom_call.1} parent=5 // pred_check_branch
        %317 = sbr.rel (%p315) target = $region40
      $region39: #{tpu_custom_call.1} parent=5 // pred_region
        // Predicated region
        $region41: #{tpu_custom_call.1} parent=39 // pred_check
          %p318 = pneg %p60
        $region42: #{tpu_custom_call.1} parent=39 // pred_check_branch
          %320 = sbr.rel (%p318) target = $region44
        $region43: #{tpu_custom_call.1} parent=39 // pred_region
          %s321 = sand.u32 %s50, 1
          %s322 = scalar_lea.sflag [#allocation5], %s321
          %s323 = sand.u32 %s50, 1
          %s324 = smul.addr %s323, 8
          %s325 = scalar_lea.vmem [#allocation4], %s324
          %327 = vsyncadd %s322, 0
          %s328 = smul.addr %s33, 2
          %s329 = sadd.s32 %s34, %s328
          %s330 = smul.addr %s329, 8
          %s331 = scalar_lea.hbm %s0, %s330
          %s333 = sshll.u32 %s331, 4
          %s334 = int_to_ptr.hbm [resolvable:$true] %s333
          %s335 = sshll.u32 %s325, 4
          %s336 = int_to_ptr.vmem [resolvable:$true] %s335
          %338 = dma.hbm_to_vmem [thread:$0]  %s334, 128, %s336, %s322
        $region44: #{tpu_custom_call.1} parent=39 // pred_fallthru
          _
      $region40: #{tpu_custom_call.1} parent=5 // pred_fallthru
        _
      %p339 = scmp.le.s32.totalorder 1, %s26
      %p340 = scmp.lt.s32.totalorder %s26, 5
      %p341 = pnand %p339, %p340
      %p342 = pneg %p341
      // Predicated region
      $region45: #{tpu_custom_call.1} parent=5 // pred_check
        _
      $region46: #{tpu_custom_call.1} parent=5 // pred_check_branch
        %344 = sbr.rel (%p341) target = $region48
      $region47: #{tpu_custom_call.1} parent=5 // pred_region
        %s345 = ssub.s32 %s26, 1
        %s346 = sand.u32 %s53, 1
        %s347 = scalar_lea.sflag [#allocation5], %s346
        %s348 = sand.u32 %s53, 1
        %s349 = smul.addr %s348, 8
        %s350 = scalar_lea.vmem [#allocation4], %s349
        // Predicated region
        $region49: #{tpu_custom_call.1} parent=47 // pred_check
          %p351 = pneg %p66
        $region50: #{tpu_custom_call.1} parent=47 // pred_check_branch
          %353 = sbr.rel (%p351) target = $region52
        $region51: #{tpu_custom_call.1} parent=47 // pred_region
          %355 = dma.done %s347, 128
        $region52: #{tpu_custom_call.1} parent=47 // pred_fallthru
          _
        // Predicated region
        $region53: #{tpu_custom_call.1} parent=47 // pred_check
          %p356 = pneg %p87
        $region54: #{tpu_custom_call.1} parent=47 // pred_check_branch
          %358 = sbr.rel (%p356) target = $region56
        $region55: #{tpu_custom_call.1} parent=47 // pred_region
          %360 = dma.done [#allocation8], 6144
        $region56: #{tpu_custom_call.1} parent=47 // pred_fallthru
          _
        // Predicated region
        $region57: #{tpu_custom_call.1} parent=47 // pred_check
          %p361 = pneg %p129
        $region58: #{tpu_custom_call.1} parent=47 // pred_check_branch
          %363 = sbr.rel (%p361) target = $region60
        $region59: #{tpu_custom_call.1} parent=47 // pred_region
          %365 = dma.done [#allocation8], 6144
        $region60: #{tpu_custom_call.1} parent=47 // pred_fallthru
          _
        // Predicated region
        $region61: #{tpu_custom_call.1} parent=47 // pred_check
          %p366 = pneg %p171
        $region62: #{tpu_custom_call.1} parent=47 // pred_check_branch
          %368 = sbr.rel (%p366) target = $region64
        $region63: #{tpu_custom_call.1} parent=47 // pred_region
          %370 = dma.done [#allocation11], 2048
        $region64: #{tpu_custom_call.1} parent=47 // pred_fallthru
          _
        %s371 = sand.u32 %s53, 1
        %s372 = scalar_lea.sflag [#allocation5], %s371
        %s373 = sand.u32 %s53, 1
        %s374 = smul.addr %s373, 8
        %s375 = scalar_lea.vmem [#allocation4], %s374
        %p376 = pneg %p66
        %p377 = pneg %p63
        %p378 = pneg %p87
        %p379 = pneg %p84
        %p380 = pneg %p108
        %p381 = pneg %p105
        %p382 = pneg %p129
        %p383 = pneg %p126
        %p384 = pneg %p150
        %p385 = pneg %p147
        %p386 = pneg %p171
        %p387 = pneg %p168
        %p388 = pneg %p192
        %p389 = pneg %p189
        %p390 = pneg %p220
        %p391 = pneg %p217
        %s392 = sand.u32 %s207, 1
        %s393 = scalar_lea.sflag [#allocation6], %s392
        %s394 = sand.u32 %s207, 1
        %s395 = smul.addr %s394, 8
        %s396 = scalar_lea.vmem [#allocation12], %s395
        %p397 = pneg %p248
        %p398 = pneg %p245
        %s399 = sand.u32 %s235, 1
        %s400 = scalar_lea.sflag [#allocation14], %s399
        %s401 = sand.u32 %s235, 1
        %s402 = smul.addr %s401, 8
        %s403 = scalar_lea.vmem [#allocation13], %s402
        %p404 = scmp.eq.s32.totalorder %s36, 0
        // Predicated region
        $region65: #{tpu_custom_call.1} parent=47 // pred_check
          %p405 = pneg %p404
        $region66: #{tpu_custom_call.1} parent=47 // pred_check_branch
          %407 = sbr.rel (%p405) target = $region68
        $region67: #{tpu_custom_call.1} parent=47 // pred_region
          %408 = vst [vmem:[#allocation2] sm:$0xf] 0.0
          %409 = vst [vmem:[#allocation3] sm:$0xf] 0.0
        $region68: #{tpu_custom_call.1} parent=47 // pred_fallthru
          _
        %v410 = vld [vmem:[%s350] sm:$0xff]
        %v411 = vld [vmem:[#allocation2] sm:$0xf]
        %v413 = vrot.slane %v410, 4
        %vm415 = vcmask 1043456
        %v416 = vsel %vm415, %v411, %v413
        %vm418 = vcmask 1045504
        %v419 = vrot.slane %v416, 2
        %v420 = vrot.slane %v413, 2
        %v421 = vsel %vm418, %v419, %v420
        %v423 = vrot.slane %v416, 4
        %v424 = vrot.slane %v413, 4
        %v425 = vsel %vm415, %v423, %v424
        %v427 = vld [vmem:[#allocation7] sm:$0xff]
        %v428 = vld [vmem:[#allocation7 + $0x8] sm:$0xff]
        %v429 = vld [vmem:[#allocation7 + $0x10] sm:$0xff]
        %v430 = vld [vmem:[#allocation7 + $0x18] sm:$0xff]
        %v431 = vld [vmem:[#allocation7 + $0x20] sm:$0xff]
        %v432 = vld [vmem:[#allocation7 + $0x28] sm:$0xff]
        %v433 = vld [vmem:[#allocation7 + $0x30] sm:$0xff]
        %v434 = vld [vmem:[#allocation7 + $0x38] sm:$0xff]
        %v435 = vld [vmem:[#allocation7 + $0x40] sm:$0xff]
        %v436 = vld [vmem:[#allocation7 + $0x48] sm:$0xff]
        %v437 = vld [vmem:[#allocation7 + $0x50] sm:$0xff]
        %v438 = vld [vmem:[#allocation7 + $0x58] sm:$0xff]
        %v439 = vld [vmem:[#allocation7 + $0x60] sm:$0xff]
        %v440 = vld [vmem:[#allocation7 + $0x68] sm:$0xff]
        %v441 = vld [vmem:[#allocation7 + $0x70] sm:$0xff]
        %v442 = vld [vmem:[#allocation7 + $0x78] sm:$0xff]
        %v443 = vld [vmem:[#allocation7 + $0x80] sm:$0xff]
        %v444 = vld [vmem:[#allocation7 + $0x88] sm:$0xff]
        %v445 = vld [vmem:[#allocation7 + $0x90] sm:$0xff]
        %v446 = vld [vmem:[#allocation7 + $0x98] sm:$0xff]
        %v447 = vld [vmem:[#allocation7 + $0xa0] sm:$0xff]
        %v448 = vld [vmem:[#allocation7 + $0xa8] sm:$0xff]
        %v449 = vld [vmem:[#allocation7 + $0xb0] sm:$0xff]
        %v450 = vld [vmem:[#allocation7 + $0xb8] sm:$0xff]
        %v451 = vld [vmem:[#allocation7 + $0xc0] sm:$0xff]
        %v452 = vld [vmem:[#allocation7 + $0xc8] sm:$0xff]
        %v453 = vld [vmem:[#allocation7 + $0xd0] sm:$0xff]
        %v454 = vld [vmem:[#allocation7 + $0xd8] sm:$0xff]
        %v455 = vld [vmem:[#allocation7 + $0xe0] sm:$0xff]
        %v456 = vld [vmem:[#allocation7 + $0xe8] sm:$0xff]
        %v457 = vld [vmem:[#allocation7 + $0xf0] sm:$0xff]
        %v458 = vld [vmem:[#allocation7 + $0xf8] sm:$0xff]
        %v459 = vld [vmem:[#allocation7 + $0x100] sm:$0xff]
        %v460 = vld [vmem:[#allocation7 + $0x108] sm:$0xff]
        %v461 = vld [vmem:[#allocation7 + $0x110] sm:$0xff]
        %v462 = vld [vmem:[#allocation7 + $0x118] sm:$0xff]
        %v463 = vld [vmem:[#allocation7 + $0x120] sm:$0xff]
        %v464 = vld [vmem:[#allocation7 + $0x128] sm:$0xff]
        %v465 = vld [vmem:[#allocation7 + $0x130] sm:$0xff]
        %v466 = vld [vmem:[#allocation7 + $0x138] sm:$0xff]
        %v467 = vld [vmem:[#allocation7 + $0x140] sm:$0xff]
        %v468 = vld [vmem:[#allocation7 + $0x148] sm:$0xff]
        %v469 = vld [vmem:[#allocation7 + $0x150] sm:$0xff]
        %v470 = vld [vmem:[#allocation7 + $0x158] sm:$0xff]
        %v471 = vld [vmem:[#allocation7 + $0x160] sm:$0xff]
        %v472 = vld [vmem:[#allocation7 + $0x168] sm:$0xff]
        %v473 = vld [vmem:[#allocation7 + $0x170] sm:$0xff]
        %v474 = vld [vmem:[#allocation7 + $0x178] sm:$0xff]
        %v475 = vld [vmem:[%s2] sm:$0x1]
        %v477 = vperm.slane %v475, 0
        %479 = vmatpush.msra.mxu0 %v442
        %480 = vmatpush.msra.mxu0 %v441
        %481 = vmatpush.msra.mxu0 %v440
        %482 = vmatpush.msra.mxu0 %v439
        %483 = vmatpush.msra.mxu0 %v438
        %484 = vmatpush.msra.mxu0 %v437
        %485 = vmatpush.msra.mxu0 %v436
        %486 = vmatpush.msra.mxu0 %v435
        %487 = vmatpush.msra.mxu0 %v434
        %488 = vmatpush.msra.mxu0 %v433
        %489 = vmatpush.msra.mxu0 %v432
        %490 = vmatpush.msra.mxu0 %v431
        %491 = vmatpush.msra.mxu0 %v430
        %492 = vmatpush.msra.mxu0 %v429
        %493 = vmatpush.msra.mxu0 %v428
        %494 = vmatpush.msra.mxu0 %v427
        %495 = vmatmul.f32.gmra.mxu0 %v416
        %v496 = vpop.f32.mrf.mxu0
        %v497 = vadd.f32 %v477, %v496
        %498 = vdwg.mxu0
        %499 = vmatpush.msra.mxu0 %v458
        %500 = vmatpush.msra.mxu0 %v457
        %501 = vmatpush.msra.mxu0 %v456
        %502 = vmatpush.msra.mxu0 %v455
        %503 = vmatpush.msra.mxu0 %v454
        %504 = vmatpush.msra.mxu0 %v453
        %505 = vmatpush.msra.mxu0 %v452
        %506 = vmatpush.msra.mxu0 %v451
        %507 = vmatpush.msra.mxu0 %v450
        %508 = vmatpush.msra.mxu0 %v449
        %509 = vmatpush.msra.mxu0 %v448
        %510 = vmatpush.msra.mxu0 %v447
        %511 = vmatpush.msra.mxu0 %v446
        %512 = vmatpush.msra.mxu0 %v445
        %513 = vmatpush.msra.mxu0 %v444
        %514 = vmatpush.msra.mxu0 %v443
        %515 = vmatmul.f32.gmra.mxu0 %v421
        %v516 = vpop.f32.mrf.mxu0
        %v517 = vadd.f32 %v497, %v516
        %518 = vdwg.mxu0
        %519 = vmatpush.msra.mxu0 %v474
        %520 = vmatpush.msra.mxu0 %v473
        %521 = vmatpush.msra.mxu0 %v472
        %522 = vmatpush.msra.mxu0 %v471
        %523 = vmatpush.msra.mxu0 %v470
        %524 = vmatpush.msra.mxu0 %v469
        %525 = vmatpush.msra.mxu0 %v468
        %526 = vmatpush.msra.mxu0 %v467
        %527 = vmatpush.msra.mxu0 %v466
        %528 = vmatpush.msra.mxu0 %v465
        %529 = vmatpush.msra.mxu0 %v464
        %530 = vmatpush.msra.mxu0 %v463
        %531 = vmatpush.msra.mxu0 %v462
        %532 = vmatpush.msra.mxu0 %v461
        %533 = vmatpush.msra.mxu0 %v460
        %534 = vmatpush.msra.mxu0 %v459
        %535 = vmatmul.f32.gmra.mxu0 %v425
        %v536 = vpop.f32.mrf.mxu0
        %v537 = vadd.f32 %v517, %v536
        %538 = vdwg.mxu0
        %v539 = vmax.f32 %v537, 0.0
        %v540 = vld [vmem:[#allocation3] sm:$0xf]
        %v542 = vrot.slane %v539, 4
        %v544 = vsel %vm415, %v540, %v542
        %545 = vst [vmem:[#allocation2] sm:$0xf] %v413
        %546 = vst [vmem:[#allocation3] sm:$0xf] %v542
        %v548 = vrot.slane %v544, 2
        %v549 = vrot.slane %v542, 2
        %v550 = vsel %vm418, %v548, %v549
        %v552 = vrot.slane %v544, 4
        %v553 = vrot.slane %v542, 4
        %v554 = vsel %vm415, %v552, %v553
        %v556 = vld [vmem:[#allocation9] sm:$0xff]
        %v557 = vld [vmem:[#allocation9 + $0x8] sm:$0xff]
        %v558 = vld [vmem:[#allocation9 + $0x10] sm:$0xff]
        %v559 = vld [vmem:[#allocation9 + $0x18] sm:$0xff]
        %v560 = vld [vmem:[#allocation9 + $0x20] sm:$0xff]
        %v561 = vld [vmem:[#allocation9 + $0x28] sm:$0xff]
        %v562 = vld [vmem:[#allocation9 + $0x30] sm:$0xff]
        %v563 = vld [vmem:[#allocation9 + $0x38] sm:$0xff]
        %v564 = vld [vmem:[#allocation9 + $0x40] sm:$0xff]
        %v565 = vld [vmem:[#allocation9 + $0x48] sm:$0xff]
        %v566 = vld [vmem:[#allocation9 + $0x50] sm:$0xff]
        %v567 = vld [vmem:[#allocation9 + $0x58] sm:$0xff]
        %v568 = vld [vmem:[#allocation9 + $0x60] sm:$0xff]
        %v569 = vld [vmem:[#allocation9 + $0x68] sm:$0xff]
        %v570 = vld [vmem:[#allocation9 + $0x70] sm:$0xff]
        %v571 = vld [vmem:[#allocation9 + $0x78] sm:$0xff]
        %v572 = vld [vmem:[#allocation9 + $0x80] sm:$0xff]
        %v573 = vld [vmem:[#allocation9 + $0x88] sm:$0xff]
        %v574 = vld [vmem:[#allocation9 + $0x90] sm:$0xff]
        %v575 = vld [vmem:[#allocation9 + $0x98] sm:$0xff]
        %v576 = vld [vmem:[#allocation9 + $0xa0] sm:$0xff]
        %v577 = vld [vmem:[#allocation9 + $0xa8] sm:$0xff]
        %v578 = vld [vmem:[#allocation9 + $0xb0] sm:$0xff]
        %v579 = vld [vmem:[#allocation9 + $0xb8] sm:$0xff]
        %v580 = vld [vmem:[#allocation9 + $0xc0] sm:$0xff]
        %v581 = vld [vmem:[#allocation9 + $0xc8] sm:$0xff]
        %v582 = vld [vmem:[#allocation9 + $0xd0] sm:$0xff]
        %v583 = vld [vmem:[#allocation9 + $0xd8] sm:$0xff]
        %v584 = vld [vmem:[#allocation9 + $0xe0] sm:$0xff]
        %v585 = vld [vmem:[#allocation9 + $0xe8] sm:$0xff]
        %v586 = vld [vmem:[#allocation9 + $0xf0] sm:$0xff]
        %v587 = vld [vmem:[#allocation9 + $0xf8] sm:$0xff]
        %v588 = vld [vmem:[#allocation9 + $0x100] sm:$0xff]
        %v589 = vld [vmem:[#allocation9 + $0x108] sm:$0xff]
        %v590 = vld [vmem:[#allocation9 + $0x110] sm:$0xff]
        %v591 = vld [vmem:[#allocation9 + $0x118] sm:$0xff]
        %v592 = vld [vmem:[#allocation9 + $0x120] sm:$0xff]
        %v593 = vld [vmem:[#allocation9 + $0x128] sm:$0xff]
        %v594 = vld [vmem:[#allocation9 + $0x130] sm:$0xff]
        %v595 = vld [vmem:[#allocation9 + $0x138] sm:$0xff]
        %v596 = vld [vmem:[#allocation9 + $0x140] sm:$0xff]
        %v597 = vld [vmem:[#allocation9 + $0x148] sm:$0xff]
        %v598 = vld [vmem:[#allocation9 + $0x150] sm:$0xff]
        %v599 = vld [vmem:[#allocation9 + $0x158] sm:$0xff]
        %v600 = vld [vmem:[#allocation9 + $0x160] sm:$0xff]
        %v601 = vld [vmem:[#allocation9 + $0x168] sm:$0xff]
        %v602 = vld [vmem:[#allocation9 + $0x170] sm:$0xff]
        %v603 = vld [vmem:[#allocation9 + $0x178] sm:$0xff]
        %v604 = vld [vmem:[%s4] sm:$0x1]
        %v606 = vperm.slane %v604, 0
        %608 = vmatpush.msra.mxu0 %v571
        %609 = vmatpush.msra.mxu0 %v570
        %610 = vmatpush.msra.mxu0 %v569
        %611 = vmatpush.msra.mxu0 %v568
        %612 = vmatpush.msra.mxu0 %v567
        %613 = vmatpush.msra.mxu0 %v566
        %614 = vmatpush.msra.mxu0 %v565
        %615 = vmatpush.msra.mxu0 %v564
        %616 = vmatpush.msra.mxu0 %v563
        %617 = vmatpush.msra.mxu0 %v562
        %618 = vmatpush.msra.mxu0 %v561
        %619 = vmatpush.msra.mxu0 %v560
        %620 = vmatpush.msra.mxu0 %v559
        %621 = vmatpush.msra.mxu0 %v558
        %622 = vmatpush.msra.mxu0 %v557
        %623 = vmatpush.msra.mxu0 %v556
        %624 = vmatmul.f32.gmra.mxu0 %v544
        %v625 = vpop.f32.mrf.mxu0
        %v626 = vadd.f32 %v606, %v625
        %627 = vdwg.mxu0
        %628 = vmatpush.msra.mxu0 %v587
        %629 = vmatpush.msra.mxu0 %v586
        %630 = vmatpush.msra.mxu0 %v585
        %631 = vmatpush.msra.mxu0 %v584
        %632 = vmatpush.msra.mxu0 %v583
        %633 = vmatpush.msra.mxu0 %v582
        %634 = vmatpush.msra.mxu0 %v581
        %635 = vmatpush.msra.mxu0 %v580
        %636 = vmatpush.msra.mxu0 %v579
        %637 = vmatpush.msra.mxu0 %v578
        %638 = vmatpush.msra.mxu0 %v577
        %639 = vmatpush.msra.mxu0 %v576
        %640 = vmatpush.msra.mxu0 %v575
        %641 = vmatpush.msra.mxu0 %v574
        %642 = vmatpush.msra.mxu0 %v573
        %643 = vmatpush.msra.mxu0 %v572
        %644 = vmatmul.f32.gmra.mxu0 %v550
        %v645 = vpop.f32.mrf.mxu0
        %v646 = vadd.f32 %v626, %v645
        %647 = vdwg.mxu0
        %648 = vmatpush.msra.mxu0 %v603
        %649 = vmatpush.msra.mxu0 %v602
        %650 = vmatpush.msra.mxu0 %v601
        %651 = vmatpush.msra.mxu0 %v600
        %652 = vmatpush.msra.mxu0 %v599
        %653 = vmatpush.msra.mxu0 %v598
        %654 = vmatpush.msra.mxu0 %v597
        %655 = vmatpush.msra.mxu0 %v596
        %656 = vmatpush.msra.mxu0 %v595
        %657 = vmatpush.msra.mxu0 %v594
        %658 = vmatpush.msra.mxu0 %v593
        %659 = vmatpush.msra.mxu0 %v592
        %660 = vmatpush.msra.mxu0 %v591
        %661 = vmatpush.msra.mxu0 %v590
        %662 = vmatpush.msra.mxu0 %v589
        %663 = vmatpush.msra.mxu0 %v588
        %664 = vmatmul.f32.gmra.mxu0 %v554
        %v665 = vpop.f32.mrf.mxu0
        %v666 = vadd.f32 %v646, %v665
        %667 = vdwg.mxu0
        %v668 = vmax.f32 %v666, 0.0
        %669 = vst [vmem:[%s403] sm:$0xff] %v668
        %v670 = vld [vmem:[#allocation10] sm:$0xff]
        %v671 = vld [vmem:[#allocation10 + $0x8] sm:$0xff]
        %v672 = vld [vmem:[#allocation10 + $0x10] sm:$0xff]
        %v673 = vld [vmem:[#allocation10 + $0x18] sm:$0xff]
        %v674 = vld [vmem:[#allocation10 + $0x20] sm:$0xff]
        %v675 = vld [vmem:[#allocation10 + $0x28] sm:$0xff]
        %v676 = vld [vmem:[#allocation10 + $0x30] sm:$0xff]
        %v677 = vld [vmem:[#allocation10 + $0x38] sm:$0xff]
        %v678 = vld [vmem:[#allocation10 + $0x40] sm:$0xff]
        %v679 = vld [vmem:[#allocation10 + $0x48] sm:$0xff]
        %v680 = vld [vmem:[#allocation10 + $0x50] sm:$0xff]
        %v681 = vld [vmem:[#allocation10 + $0x58] sm:$0xff]
        %v682 = vld [vmem:[#allocation10 + $0x60] sm:$0xff]
        %v683 = vld [vmem:[#allocation10 + $0x68] sm:$0xff]
        %v684 = vld [vmem:[#allocation10 + $0x70] sm:$0xff]
        %v685 = vld [vmem:[#allocation10 + $0x78] sm:$0xff]
        %v686 = vld [vmem:[%s6] sm:$0x1]
        %v688 = vperm.slane %v686, 0
        %690 = vmatpush.msra.mxu0 %v685
        %691 = vmatpush.msra.mxu0 %v684
        %692 = vmatpush.msra.mxu0 %v683
        %693 = vmatpush.msra.mxu0 %v682
        %694 = vmatpush.msra.mxu0 %v681
        %695 = vmatpush.msra.mxu0 %v680
        %696 = vmatpush.msra.mxu0 %v679
        %697 = vmatpush.msra.mxu0 %v678
        %698 = vmatpush.msra.mxu0 %v677
        %699 = vmatpush.msra.mxu0 %v676
        %700 = vmatpush.msra.mxu0 %v675
        %701 = vmatpush.msra.mxu0 %v674
        %702 = vmatpush.msra.mxu0 %v673
        %703 = vmatpush.msra.mxu0 %v672
        %704 = vmatpush.msra.mxu0 %v671
        %705 = vmatpush.msra.mxu0 %v670
        %706 = vmatmul.f32.gmra.mxu0 %v410
        %v707 = vpop.f32.mrf.mxu0
        %v708 = vadd.f32 %v688, %v707
        %709 = vdwg.mxu0
        %v710 = vadd.f32 %v708, %v668
        %v711 = vmax.f32 %v710, 0.0
        %712 = vst [vmem:[%s396] sm:$0xff] %v711
        %s713 = sand.u32 %s207, 1
        %s714 = scalar_lea.sflag [#allocation6], %s713
        %s715 = sand.u32 %s207, 1
        %s716 = smul.addr %s715, 8
        %s717 = scalar_lea.vmem [#allocation12], %s716
        %s718 = sand.u32 %s235, 1
        %s719 = scalar_lea.sflag [#allocation14], %s718
        %s720 = sand.u32 %s235, 1
        %s721 = smul.addr %s720, 8
        %s722 = scalar_lea.vmem [#allocation13], %s721
        // Predicated region
        $region69: #{tpu_custom_call.1} parent=47 // pred_check
          %p723 = pneg %p217
        $region70: #{tpu_custom_call.1} parent=47 // pred_check_branch
          %725 = sbr.rel (%p723) target = $region72
        $region71: #{tpu_custom_call.1} parent=47 // pred_region
          %727 = vsyncadd %s714, 0
          %s728 = smul.addr %s35, 2
          %s729 = sadd.s32 %s36, %s728
          %s730 = smul.addr %s729, 8
          %s731 = scalar_lea.hbm %s7, %s730
          %s733 = sshll.u32 %s717, 4
          %s734 = int_to_ptr.vmem [resolvable:$true] %s733
          %s735 = sshll.u32 %s731, 4
          %s736 = int_to_ptr.hbm [resolvable:$true] %s735
          %738 = dma.vmem_to_hbm [thread:$0]  %s734, 128, %s736, %s714
        $region72: #{tpu_custom_call.1} parent=47 // pred_fallthru
          _
        // Predicated region
        $region73: #{tpu_custom_call.1} parent=47 // pred_check
          %p739 = pneg %p245
        $region74: #{tpu_custom_call.1} parent=47 // pred_check_branch
          %741 = sbr.rel (%p739) target = $region76
        $region75: #{tpu_custom_call.1} parent=47 // pred_region
          %743 = vsyncadd %s719, 0
          %s744 = smul.addr %s35, 2
          %s745 = sadd.s32 %s36, %s744
          %s746 = smul.addr %s745, 8
          %s747 = scalar_lea.hbm %s8, %s746
          %s749 = sshll.u32 %s722, 4
          %s750 = int_to_ptr.vmem [resolvable:$true] %s749
          %s751 = sshll.u32 %s747, 4
          %s752 = int_to_ptr.hbm [resolvable:$true] %s751
          %754 = dma.vmem_to_hbm [thread:$0]  %s750, 128, %s752, %s719
        $region76: #{tpu_custom_call.1} parent=47 // pred_fallthru
          _
      $region48: #{tpu_custom_call.1} parent=5 // pred_fallthru
        _
      %p755 = scmp.le.s32.totalorder 2, %s26
      // Predicated region
      $region77: #{tpu_custom_call.1} parent=5 // pred_check
        %p756 = pneg %p755
      $region78: #{tpu_custom_call.1} parent=5 // pred_check_branch
        %758 = sbr.rel (%p756) target = $region80
      $region79: #{tpu_custom_call.1} parent=5 // pred_region
        %s759 = ssub.s32 %s26, 2
        // Predicated region
        $region81: #{tpu_custom_call.1} parent=79 // pred_check
          %p760 = pneg %p223
        $region82: #{tpu_custom_call.1} parent=79 // pred_check_branch
          %762 = sbr.rel (%p760) target = $region84
        $region83: #{tpu_custom_call.1} parent=79 // pred_region
          %s763 = sand.u32 %s208, 1
          %s764 = scalar_lea.sflag [#allocation6], %s763
          %s765 = sand.u32 %s208, 1
          %s766 = smul.addr %s765, 8
          %s767 = scalar_lea.vmem [#allocation12], %s766
          %769 = dma.done %s764, 128
        $region84: #{tpu_custom_call.1} parent=79 // pred_fallthru
          _
        // Predicated region
        $region85: #{tpu_custom_call.1} parent=79 // pred_check
          %p770 = pneg %p251
        $region86: #{tpu_custom_call.1} parent=79 // pred_check_branch
          %772 = sbr.rel (%p770) target = $region88
        $region87: #{tpu_custom_call.1} parent=79 // pred_region
          %s773 = sand.u32 %s236, 1
          %s774 = scalar_lea.sflag [#allocation14], %s773
          %s775 = sand.u32 %s236, 1
          %s776 = smul.addr %s775, 8
          %s777 = scalar_lea.vmem [#allocation13], %s776
          %779 = dma.done %s774, 128
        $region88: #{tpu_custom_call.1} parent=79 // pred_fallthru
          _
      $region80: #{tpu_custom_call.1} parent=5 // pred_fallthru
        _
    $region6: #{tpu_custom_call.1} parent=1 // loop_footer
      %s30 = sadd.s32 1, %s26
    $region7: #{tpu_custom_call.1} parent=1 // loop_footer_branch
      %25 = sbr.rel target = $region3
    $region8: #{tpu_custom_call.1} parent=1 // loop_exit
      _
    %780 = vsyncpa [#allocation5], 1
    %s781 = scalar_lea.sflag [#allocation5], 1
    %782 = vsyncpa %s781, 1
    %783 = vsyncpa [#allocation8], 1
    %784 = vsyncpa [#allocation11], 1
    %785 = vsyncpa [#allocation6], 1
    %s786 = scalar_lea.sflag [#allocation6], 1
    %787 = vsyncpa %s786, 1
    %788 = vsyncpa [#allocation14], 1
    %s789 = scalar_lea.sflag [#allocation14], 1
    %790 = vsyncpa %s789, 1

</llo_original>
